<compile_context>
chip_gen: v5e
topology: v5e:2x2
jax: 0.10.0
libtpu: 0.0.40
codegen_flags: <defaults>
</compile_context>

<pallas_src>
import math

import jax
import jax.numpy as jnp
from jax.experimental import pallas as pl
from jax.experimental.pallas import tpu as pltpu  # noqa: F401  (kept for TPU-specific extensions)

# ---------------- config (small, consistent with the module) ----------------
N = 2          # batch
L = 8          # sequence length
D = 32         # hidden_size
H = 4          # num_attention_heads
DH = D // H    # attention_head_size
I = 64         # intermediate_size
EPS = 1e-12    # layer_norm_eps
NL = N * L     # flattened (batch, seq) rows


def _gelu(x):
    # exact erf-based gelu, same as the reference implementation
    return x * 0.5 * (1.0 + jax.lax.erf(x / math.sqrt(2.0)))


def _layernorm(x, gamma, beta):
    # matches BertLayerNorm: biased variance, eps inside sqrt (rsqrt -> EUP)
    u = jnp.mean(x, axis=-1, keepdims=True)
    s = jnp.mean((x - u) ** 2, axis=-1, keepdims=True)
    return gamma * ((x - u) * jax.lax.rsqrt(s + EPS)) + beta


def _layernorm_ref(x, gamma, beta):
    u = jnp.mean(x, axis=-1, keepdims=True)
    s = jnp.mean((x - u) ** 2, axis=-1, keepdims=True)
    return gamma * ((x - u) / jnp.sqrt(s + EPS)) + beta


def bert_layer_kernel(
    x_ref,                # (NL, D)   flattened hidden states
    mask_ref,             # (NL, NL)  additive block-diagonal batch mask (0 / -1e30)
    wqkv_ref, bqkv_ref,   # (D, 3D), (1, 3D)  fused + pre-transposed Q/K/V
    wao_ref, bao_ref,     # (D, D), (1, D)    attention-output dense (pre-transposed)
    g1_ref, be1_ref,      # (1, D), (1, D)    attention LayerNorm
    wi_ref, bi_ref,       # (D, I), (1, I)    intermediate dense (pre-transposed)
    wo_ref, bo_ref,       # (I, D), (1, D)    output dense (pre-transposed)
    g2_ref, be2_ref,      # (1, D), (1, D)    output LayerNorm
    out_ref,              # (NL, D)
    att_ref,              # (NL, H*NL)  lane-dense attention probs, head h at lane h*NL
):
    x = x_ref[...]                                            # (NL, D)

    # --- fused Q/K/V projection: one (NL,D) x (D,3D) matmul, no transposes ---
    qkv = jnp.dot(x, wqkv_ref[...], preferred_element_type=jnp.float32) + bqkv_ref[...]
    scale = 1.0 / math.sqrt(DH)
    q = qkv[:, 0:D] * scale          # fold 1/sqrt(DH) into Q once
    k = qkv[:, D:2 * D]
    v = qkv[:, 2 * D:3 * D]

    add_mask = mask_ref[...]                                  # (NL, NL), 0 / -1e30

    # Accumulator for the attention-output dense:
    #   ctx @ Wao + bao + x  ==  x + bao + sum_h ctx_h @ Wao[h-stripe]
    acc = x + bao_ref[...]                                    # (NL, D)

    for h in range(H):                                        # static loop over heads
        lo = h * DH
        qh = q[:, lo:lo + DH]                                 # (NL, DH)
        kh = k[:, lo:lo + DH]
        vh = v[:, lo:lo + DH]
        # contraction over DH of both operands (no explicit .T)
        s = jax.lax.dot_general(qh, kh, (((1,), (1,)), ((), ())),
                                preferred_element_type=jnp.float32)      # (NL, NL)
        s = s + add_mask                                      # mask cross-batch keys
        m = jnp.max(s, axis=-1, keepdims=True)
        e = jnp.exp(s - m)
        denom = jnp.sum(e, axis=-1, keepdims=True)
        probs = e / denom                                     # exact softmax(dim=-1)
        att_ref[:, h * NL:(h + 1) * NL] = probs               # lane-dense att_map slab
        ctx_h = jnp.dot(probs, vh, preferred_element_type=jnp.float32)   # (NL, DH)
        # fold this head's context straight into the Wao matmul (stripe of rows)
        acc = acc + jnp.dot(ctx_h, wao_ref[lo:lo + DH, :],
                            preferred_element_type=jnp.float32)

    # --- BertSelfOutput: (dense + bias + residual already in acc) + LayerNorm ---
    attention_output = _layernorm(acc, g1_ref[...], be1_ref[...])

    # --- BertIntermediate: dense + gelu ---
    inter = _gelu(jnp.dot(attention_output, wi_ref[...],
                          preferred_element_type=jnp.float32) + bi_ref[...])   # (NL, I)

    # --- BertOutput: dense + residual + LayerNorm ---
    out_dense = jnp.dot(inter, wo_ref[...], preferred_element_type=jnp.float32) + bo_ref[...]
    out_ref[...] = _layernorm(out_dense + attention_output, g2_ref[...], be2_ref[...])


def prepare_params(params):
    """One-time host-side layout plumbing: pre-transpose weights to (in, out),
    fuse Q/K/V, and build the additive block-diagonal batch mask."""
    (wq, bq, wk, bk, wv, bv, wao, bao, g1, be1, wi, bi, wo, bo, g2, be2) = params
    wqkv = jnp.concatenate([wq.T, wk.T, wv.T], axis=1)        # (D, 3D)
    bqkv = jnp.concatenate([bq, bk, bv], axis=1)              # (1, 3D)
    row_b = (jnp.arange(NL) // L)[:, None]
    col_b = (jnp.arange(NL) // L)[None, :]
    add_mask = jnp.where(row_b == col_b, 0.0, -1e30).astype(jnp.float32)   # (NL, NL)
    # TODO(synk): at real head sizes (DH>=64), lay out wqkv columns head-major and
    # 128-lane aligned so per-head q/k/v slices are whole-vreg selects.
    return (add_mask, wqkv, bqkv, wao.T, bao, g1, be1, wi.T, bi, wo.T, bo, g2, be2)


@jax.jit
def bert_layer_forward(x, prepped):
    """x: (N, L, D) float32. Returns (layer_output (N,L,D), att_map (N,H,L,L))."""
    (add_mask, wqkv, bqkv, wao_t, bao, g1, be1, wi_t, bi, wo_t, bo, g2, be2) = prepped

    x_flat = x.reshape(NL, D)

    out_flat, att_flat = pl.pallas_call(
        bert_layer_kernel,
        out_shape=[
            jax.ShapeDtypeStruct((NL, D), jnp.float32),
            jax.ShapeDtypeStruct((NL, H * NL), jnp.float32),
        ],
    )(x_flat, add_mask, wqkv, bqkv, wao_t, bao, g1, be1, wi_t, bi, wo_t, bo, g2, be2)

    out = out_flat.reshape(N, L, D)
    # Layout plumbing (fused under jit): (NL, H*NL) -> (NL, H, NL) -> per-batch
    # diagonal (L, L) blocks -> (N, H, L, L).
    att_hnl = att_flat.reshape(NL, H, NL)
    att = jnp.stack(
        [att_hnl[b * L:(b + 1) * L, :, b * L:(b + 1) * L] for b in range(N)], axis=0)
    att = att.transpose(0, 2, 1, 3)                           # (N, H, L, L)
    return out, att


# ------------------------ pure-JAX reference for validation ------------------------
def bert_layer_ref(x, params):
    (wq, bq, wk, bk, wv, bv, wao, bao, g1, be1, wi, bi, wo, bo, g2, be2) = params
    q = x @ wq.T + bq
    k = x @ wk.T + bk
    v = x @ wv.T + bv

    def split(t):  # (N, L, D) -> (N, H, L, DH)
        return t.reshape(N, L, H, DH).transpose(0, 2, 1, 3)

    qh, kh, vh = split(q), split(k), split(v)
    scores = jnp.einsum("nhqd,nhkd->nhqk", qh, kh) / math.sqrt(DH)
    probs = jax.nn.softmax(scores, axis=-1)
    ctx = jnp.einsum("nhqk,nhkd->nhqd", probs, vh)
    ctx = ctx.transpose(0, 2, 1, 3).reshape(N, L, D)

    attn = _layernorm_ref(ctx @ wao.T + bao + x, g1, be1)
    inter = _gelu(attn @ wi.T + bi)
    out = _layernorm_ref(inter @ wo.T + bo + attn, g2, be2)
    return out, probs


def make_params(key):
    ks = jax.random.split(key, 8)
    s = 0.02
    wq = s * jax.random.normal(ks[0], (D, D), jnp.float32)
    wk = s * jax.random.normal(ks[1], (D, D), jnp.float32)
    wv = s * jax.random.normal(ks[2], (D, D), jnp.float32)
    wao = s * jax.random.normal(ks[3], (D, D), jnp.float32)
    wi = s * jax.random.normal(ks[4], (I, D), jnp.float32)
    wo = s * jax.random.normal(ks[5], (D, I), jnp.float32)
    bq = 0.01 * jax.random.normal(ks[6], (1, D), jnp.float32)
    bk = jnp.zeros((1, D), jnp.float32)
    bv = 0.01 * jax.random.normal(ks[7], (1, D), jnp.float32)
    bao = jnp.zeros((1, D), jnp.float32)
    bi = jnp.zeros((1, I), jnp.float32)
    bo = jnp.zeros((1, D), jnp.float32)
    g1 = jnp.ones((1, D), jnp.float32)
    be1 = jnp.zeros((1, D), jnp.float32)
    g2 = jnp.ones((1, D), jnp.float32)
    be2 = jnp.zeros((1, D), jnp.float32)
    return (wq, bq, wk, bk, wv, bv, wao, bao, g1, be1, wi, bi, wo, bo, g2, be2)


if __name__ == "__main__":
    key = jax.random.PRNGKey(0)
    kx, kp = jax.random.split(key)
    x = jax.random.normal(kx, (N, L, D), jnp.float32)
    params = make_params(kp)

    prepped = jax.block_until_ready(prepare_params(params))   # one-time weight plumbing

    out, att_map = bert_layer_forward(x, prepped)
    out = jax.block_until_ready(out)
    att_map = jax.block_until_ready(att_map)

    ref_out, ref_att = bert_layer_ref(x, params)
    assert out.shape == (N, L, D) and att_map.shape == (N, H, L, L)
    assert jnp.allclose(out, ref_out, rtol=2e-3, atol=2e-3)
    assert jnp.allclose(att_map, ref_att, rtol=2e-3, atol=2e-3)

    print("KERNEL_OK")
</pallas_src>

<mosaic_0001>
module attributes {stable_mosaic.version = 11 : i64} {
  func.func @bert_layer_kernel(%arg0: memref<16x32xf32, #tpu.memory_space<vmem>>, %arg1: memref<16x16xf32, #tpu.memory_space<vmem>>, %arg2: memref<32x96xf32, #tpu.memory_space<vmem>>, %arg3: memref<1x96xf32, #tpu.memory_space<vmem>>, %arg4: memref<32x32xf32, #tpu.memory_space<vmem>>, %arg5: memref<1x32xf32, #tpu.memory_space<vmem>>, %arg6: memref<1x32xf32, #tpu.memory_space<vmem>>, %arg7: memref<1x32xf32, #tpu.memory_space<vmem>>, %arg8: memref<32x64xf32, #tpu.memory_space<vmem>>, %arg9: memref<1x64xf32, #tpu.memory_space<vmem>>, %arg10: memref<64x32xf32, #tpu.memory_space<vmem>>, %arg11: memref<1x32xf32, #tpu.memory_space<vmem>>, %arg12: memref<1x32xf32, #tpu.memory_space<vmem>>, %arg13: memref<1x32xf32, #tpu.memory_space<vmem>>, %arg14: memref<16x32xf32, #tpu.memory_space<vmem>>, %arg15: memref<16x64xf32, #tpu.memory_space<vmem>>) attributes {dimension_semantics = [], scalar_prefetch = 0 : i64, scratch_operands = 0 : i64, tpu.core_type = #tpu.core_type<tc>} {
    %c0 = arith.constant 0 : index
    %c0_0 = arith.constant 0 : index
    %0 = vector.load %arg0[%c0, %c0_0] : memref<16x32xf32, #tpu.memory_space<vmem>>, vector<16x32xf32>
    %c0_1 = arith.constant 0 : index
    %c0_2 = arith.constant 0 : index
    %1 = vector.load %arg2[%c0_1, %c0_2] : memref<32x96xf32, #tpu.memory_space<vmem>>, vector<32x96xf32>
    %cst = arith.constant dense<0.000000e+00> : vector<16x96xf32>
    %2 = tpu.matmul %0, %1, %cst {dimension_numbers = #tpu.dot_dimension_numbers<[1], [0], [0], [1], [0, 0, 1, 1], [], []>} : vector<16x32xf32>, vector<32x96xf32>, vector<16x96xf32> -> vector<16x96xf32>
    %c0_3 = arith.constant 0 : index
    %c0_4 = arith.constant 0 : index
    %3 = vector.load %arg3[%c0_3, %c0_4] : memref<1x96xf32, #tpu.memory_space<vmem>>, vector<1x96xf32>
    %4 = vector.broadcast %3 : vector<1x96xf32> to vector<16x96xf32>
    %5 = arith.addf %2, %4 : vector<16x96xf32>
    %6 = vector.extract_strided_slice %5 {offsets = [0, 0], sizes = [16, 32], strides = [1, 1]} : vector<16x96xf32> to vector<16x32xf32>
    %cst_5 = arith.constant 0.353553385 : f32
    %7 = vector.broadcast %cst_5 : f32 to vector<16x32xf32>
    %8 = arith.mulf %6, %7 : vector<16x32xf32>
    %9 = vector.extract_strided_slice %5 {offsets = [0, 32], sizes = [16, 32], strides = [1, 1]} : vector<16x96xf32> to vector<16x32xf32>
    %10 = vector.extract_strided_slice %5 {offsets = [0, 64], sizes = [16, 32], strides = [1, 1]} : vector<16x96xf32> to vector<16x32xf32>
    %c0_6 = arith.constant 0 : index
    %c0_7 = arith.constant 0 : index
    %11 = vector.load %arg1[%c0_6, %c0_7] : memref<16x16xf32, #tpu.memory_space<vmem>>, vector<16x16xf32>
    %c0_8 = arith.constant 0 : index
    %c0_9 = arith.constant 0 : index
    %12 = vector.load %arg5[%c0_8, %c0_9] : memref<1x32xf32, #tpu.memory_space<vmem>>, vector<1x32xf32>
    %13 = vector.broadcast %12 : vector<1x32xf32> to vector<16x32xf32>
    %14 = arith.addf %0, %13 : vector<16x32xf32>
    %15 = vector.extract_strided_slice %8 {offsets = [0, 0], sizes = [16, 8], strides = [1, 1]} : vector<16x32xf32> to vector<16x8xf32>
    %16 = vector.extract_strided_slice %9 {offsets = [0, 0], sizes = [16, 8], strides = [1, 1]} : vector<16x32xf32> to vector<16x8xf32>
    %17 = vector.extract_strided_slice %10 {offsets = [0, 0], sizes = [16, 8], strides = [1, 1]} : vector<16x32xf32> to vector<16x8xf32>
    %cst_10 = arith.constant dense<0.000000e+00> : vector<16x16xf32>
    %18 = tpu.matmul %15, %16, %cst_10 {dimension_numbers = #tpu.dot_dimension_numbers<[1], [1], [0], [0], [0, 0, 1, 0], [], []>} : vector<16x8xf32>, vector<16x8xf32>, vector<16x16xf32> -> vector<16x16xf32>
    %19 = arith.addf %18, %11 : vector<16x16xf32>
    %cst_11 = arith.constant dense<0xFF800000> : vector<16xf32>
    %20 = vector.multi_reduction <maximumf>, %19, %cst_11 [1] : vector<16x16xf32> to vector<16xf32>
    %21 = vector.shape_cast %20 : vector<16xf32> to vector<16x1xf32>
    %22 = vector.broadcast %21 : vector<16x1xf32> to vector<16x16xf32>
    %23 = arith.subf %19, %22 : vector<16x16xf32>
    %24 = math.exp %23 : vector<16x16xf32>
    %cst_12 = arith.constant dense<0.000000e+00> : vector<16xf32>
    %25 = vector.multi_reduction <add>, %24, %cst_12 [1] : vector<16x16xf32> to vector<16xf32>
    %26 = vector.shape_cast %25 : vector<16xf32> to vector<16x1xf32>
    %27 = vector.broadcast %26 : vector<16x1xf32> to vector<16x16xf32>
    %28 = arith.divf %24, %27 : vector<16x16xf32>
    %c0_13 = arith.constant 0 : index
    %c0_14 = arith.constant 0 : index
    %29 = vector.load %arg15[%c0_13, %c0_14] : memref<16x64xf32, #tpu.memory_space<vmem>>, vector<16x16xf32>
    tpu.vector_store %arg15[%c0_13, %c0_14], %28 {strides = array<i32>} : memref<16x64xf32, #tpu.memory_space<vmem>>, vector<16x16xf32>,
    %cst_15 = arith.constant dense<0.000000e+00> : vector<16x8xf32>
    %30 = tpu.matmul %28, %17, %cst_15 {dimension_numbers = #tpu.dot_dimension_numbers<[1], [0], [0], [1], [0, 0, 1, 1], [], []>} : vector<16x16xf32>, vector<16x8xf32>, vector<16x8xf32> -> vector<16x8xf32>
    %c0_16 = arith.constant 0 : index
    %c0_17 = arith.constant 0 : index
    %31 = vector.load %arg4[%c0_16, %c0_17] : memref<32x32xf32, #tpu.memory_space<vmem>>, vector<8x32xf32>
    %cst_18 = arith.constant dense<0.000000e+00> : vector<16x32xf32>
    %32 = tpu.matmul %30, %31, %cst_18 {dimension_numbers = #tpu.dot_dimension_numbers<[1], [0], [0], [1], [0, 0, 1, 1], [], []>} : vector<16x8xf32>, vector<8x32xf32>, vector<16x32xf32> -> vector<16x32xf32>
    %33 = arith.addf %14, %32 : vector<16x32xf32>
    %34 = vector.extract_strided_slice %8 {offsets = [0, 8], sizes = [16, 8], strides = [1, 1]} : vector<16x32xf32> to vector<16x8xf32>
    %35 = vector.extract_strided_slice %9 {offsets = [0, 8], sizes = [16, 8], strides = [1, 1]} : vector<16x32xf32> to vector<16x8xf32>
    %36 = vector.extract_strided_slice %10 {offsets = [0, 8], sizes = [16, 8], strides = [1, 1]} : vector<16x32xf32> to vector<16x8xf32>
    %cst_19 = arith.constant dense<0.000000e+00> : vector<16x16xf32>
    %37 = tpu.matmul %34, %35, %cst_19 {dimension_numbers = #tpu.dot_dimension_numbers<[1], [1], [0], [0], [0, 0, 1, 0], [], []>} : vector<16x8xf32>, vector<16x8xf32>, vector<16x16xf32> -> vector<16x16xf32>
    %38 = arith.addf %37, %11 : vector<16x16xf32>
    %cst_20 = arith.constant dense<0xFF800000> : vector<16xf32>
    %39 = vector.multi_reduction <maximumf>, %38, %cst_20 [1] : vector<16x16xf32> to vector<16xf32>
    %40 = vector.shape_cast %39 : vector<16xf32> to vector<16x1xf32>
    %41 = vector.broadcast %40 : vector<16x1xf32> to vector<16x16xf32>
    %42 = arith.subf %38, %41 : vector<16x16xf32>
    %43 = math.exp %42 : vector<16x16xf32>
    %cst_21 = arith.constant dense<0.000000e+00> : vector<16xf32>
    %44 = vector.multi_reduction <add>, %43, %cst_21 [1] : vector<16x16xf32> to vector<16xf32>
    %45 = vector.shape_cast %44 : vector<16xf32> to vector<16x1xf32>
    %46 = vector.broadcast %45 : vector<16x1xf32> to vector<16x16xf32>
    %47 = arith.divf %43, %46 : vector<16x16xf32>
    %c0_22 = arith.constant 0 : index
    %c16 = arith.constant 16 : index
    %48 = vector.load %arg15[%c0_22, %c16] : memref<16x64xf32, #tpu.memory_space<vmem>>, vector<16x16xf32>
    tpu.vector_store %arg15[%c0_22, %c16], %47 {strides = array<i32>} : memref<16x64xf32, #tpu.memory_space<vmem>>, vector<16x16xf32>,
    %cst_23 = arith.constant dense<0.000000e+00> : vector<16x8xf32>
    %49 = tpu.matmul %47, %36, %cst_23 {dimension_numbers = #tpu.dot_dimension_numbers<[1], [0], [0], [1], [0, 0, 1, 1], [], []>} : vector<16x16xf32>, vector<16x8xf32>, vector<16x8xf32> -> vector<16x8xf32>
    %c8 = arith.constant 8 : index
    %c0_24 = arith.constant 0 : index
    %50 = vector.load %arg4[%c8, %c0_24] : memref<32x32xf32, #tpu.memory_space<vmem>>, vector<8x32xf32>
    %cst_25 = arith.constant dense<0.000000e+00> : vector<16x32xf32>
    %51 = tpu.matmul %49, %50, %cst_25 {dimension_numbers = #tpu.dot_dimension_numbers<[1], [0], [0], [1], [0, 0, 1, 1], [], []>} : vector<16x8xf32>, vector<8x32xf32>, vector<16x32xf32> -> vector<16x32xf32>
    %52 = arith.addf %33, %51 : vector<16x32xf32>
    %53 = vector.extract_strided_slice %8 {offsets = [0, 16], sizes = [16, 8], strides = [1, 1]} : vector<16x32xf32> to vector<16x8xf32>
    %54 = vector.extract_strided_slice %9 {offsets = [0, 16], sizes = [16, 8], strides = [1, 1]} : vector<16x32xf32> to vector<16x8xf32>
    %55 = vector.extract_strided_slice %10 {offsets = [0, 16], sizes = [16, 8], strides = [1, 1]} : vector<16x32xf32> to vector<16x8xf32>
    %cst_26 = arith.constant dense<0.000000e+00> : vector<16x16xf32>
    %56 = tpu.matmul %53, %54, %cst_26 {dimension_numbers = #tpu.dot_dimension_numbers<[1], [1], [0], [0], [0, 0, 1, 0], [], []>} : vector<16x8xf32>, vector<16x8xf32>, vector<16x16xf32> -> vector<16x16xf32>
    %57 = arith.addf %56, %11 : vector<16x16xf32>
    %cst_27 = arith.constant dense<0xFF800000> : vector<16xf32>
    %58 = vector.multi_reduction <maximumf>, %57, %cst_27 [1] : vector<16x16xf32> to vector<16xf32>
    %59 = vector.shape_cast %58 : vector<16xf32> to vector<16x1xf32>
    %60 = vector.broadcast %59 : vector<16x1xf32> to vector<16x16xf32>
    %61 = arith.subf %57, %60 : vector<16x16xf32>
    %62 = math.exp %61 : vector<16x16xf32>
    %cst_28 = arith.constant dense<0.000000e+00> : vector<16xf32>
    %63 = vector.multi_reduction <add>, %62, %cst_28 [1] : vector<16x16xf32> to vector<16xf32>
    %64 = vector.shape_cast %63 : vector<16xf32> to vector<16x1xf32>
    %65 = vector.broadcast %64 : vector<16x1xf32> to vector<16x16xf32>
    %66 = arith.divf %62, %65 : vector<16x16xf32>
    %c0_29 = arith.constant 0 : index
    %c32 = arith.constant 32 : index
    %67 = vector.load %arg15[%c0_29, %c32] : memref<16x64xf32, #tpu.memory_space<vmem>>, vector<16x16xf32>
    tpu.vector_store %arg15[%c0_29, %c32], %66 {strides = array<i32>} : memref<16x64xf32, #tpu.memory_space<vmem>>, vector<16x16xf32>,
    %cst_30 = arith.constant dense<0.000000e+00> : vector<16x8xf32>
    %68 = tpu.matmul %66, %55, %cst_30 {dimension_numbers = #tpu.dot_dimension_numbers<[1], [0], [0], [1], [0, 0, 1, 1], [], []>} : vector<16x16xf32>, vector<16x8xf32>, vector<16x8xf32> -> vector<16x8xf32>
    %c16_31 = arith.constant 16 : index
    %c0_32 = arith.constant 0 : index
    %69 = vector.load %arg4[%c16_31, %c0_32] : memref<32x32xf32, #tpu.memory_space<vmem>>, vector<8x32xf32>
    %cst_33 = arith.constant dense<0.000000e+00> : vector<16x32xf32>
    %70 = tpu.matmul %68, %69, %cst_33 {dimension_numbers = #tpu.dot_dimension_numbers<[1], [0], [0], [1], [0, 0, 1, 1], [], []>} : vector<16x8xf32>, vector<8x32xf32>, vector<16x32xf32> -> vector<16x32xf32>
    %71 = arith.addf %52, %70 : vector<16x32xf32>
    %72 = vector.extract_strided_slice %8 {offsets = [0, 24], sizes = [16, 8], strides = [1, 1]} : vector<16x32xf32> to vector<16x8xf32>
    %73 = vector.extract_strided_slice %9 {offsets = [0, 24], sizes = [16, 8], strides = [1, 1]} : vector<16x32xf32> to vector<16x8xf32>
    %74 = vector.extract_strided_slice %10 {offsets = [0, 24], sizes = [16, 8], strides = [1, 1]} : vector<16x32xf32> to vector<16x8xf32>
    %cst_34 = arith.constant dense<0.000000e+00> : vector<16x16xf32>
    %75 = tpu.matmul %72, %73, %cst_34 {dimension_numbers = #tpu.dot_dimension_numbers<[1], [1], [0], [0], [0, 0, 1, 0], [], []>} : vector<16x8xf32>, vector<16x8xf32>, vector<16x16xf32> -> vector<16x16xf32>
    %76 = arith.addf %75, %11 : vector<16x16xf32>
    %cst_35 = arith.constant dense<0xFF800000> : vector<16xf32>
    %77 = vector.multi_reduction <maximumf>, %76, %cst_35 [1] : vector<16x16xf32> to vector<16xf32>
    %78 = vector.shape_cast %77 : vector<16xf32> to vector<16x1xf32>
    %79 = vector.broadcast %78 : vector<16x1xf32> to vector<16x16xf32>
    %80 = arith.subf %76, %79 : vector<16x16xf32>
    %81 = math.exp %80 : vector<16x16xf32>
    %cst_36 = arith.constant dense<0.000000e+00> : vector<16xf32>
    %82 = vector.multi_reduction <add>, %81, %cst_36 [1] : vector<16x16xf32> to vector<16xf32>
    %83 = vector.shape_cast %82 : vector<16xf32> to vector<16x1xf32>
    %84 = vector.broadcast %83 : vector<16x1xf32> to vector<16x16xf32>
    %85 = arith.divf %81, %84 : vector<16x16xf32>
    %c0_37 = arith.constant 0 : index
    %c48 = arith.constant 48 : index
    %86 = vector.load %arg15[%c0_37, %c48] : memref<16x64xf32, #tpu.memory_space<vmem>>, vector<16x16xf32>
    tpu.vector_store %arg15[%c0_37, %c48], %85 {strides = array<i32>} : memref<16x64xf32, #tpu.memory_space<vmem>>, vector<16x16xf32>,
    %cst_38 = arith.constant dense<0.000000e+00> : vector<16x8xf32>
    %87 = tpu.matmul %85, %74, %cst_38 {dimension_numbers = #tpu.dot_dimension_numbers<[1], [0], [0], [1], [0, 0, 1, 1], [], []>} : vector<16x16xf32>, vector<16x8xf32>, vector<16x8xf32> -> vector<16x8xf32>
    %c24 = arith.constant 24 : index
    %c0_39 = arith.constant 0 : index
    %88 = vector.load %arg4[%c24, %c0_39] : memref<32x32xf32, #tpu.memory_space<vmem>>, vector<8x32xf32>
    %cst_40 = arith.constant dense<0.000000e+00> : vector<16x32xf32>
    %89 = tpu.matmul %87, %88, %cst_40 {dimension_numbers = #tpu.dot_dimension_numbers<[1], [0], [0], [1], [0, 0, 1, 1], [], []>} : vector<16x8xf32>, vector<8x32xf32>, vector<16x32xf32> -> vector<16x32xf32>
    %90 = arith.addf %71, %89 : vector<16x32xf32>
    %c0_41 = arith.constant 0 : index
    %c0_42 = arith.constant 0 : index
    %91 = vector.load %arg6[%c0_41, %c0_42] : memref<1x32xf32, #tpu.memory_space<vmem>>, vector<1x32xf32>
    %c0_43 = arith.constant 0 : index
    %c0_44 = arith.constant 0 : index
    %92 = vector.load %arg7[%c0_43, %c0_44] : memref<1x32xf32, #tpu.memory_space<vmem>>, vector<1x32xf32>
    %cst_45 = arith.constant dense<0.000000e+00> : vector<16xf32>
    %93 = vector.multi_reduction <add>, %90, %cst_45 [1] : vector<16x32xf32> to vector<16xf32>
    %94 = vector.shape_cast %93 : vector<16xf32> to vector<16x1xf32>
    %cst_46 = arith.constant 3.200000e+01 : f32
    %95 = vector.broadcast %cst_46 : f32 to vector<16x1xf32>
    %96 = arith.divf %94, %95 : vector<16x1xf32>
    %97 = vector.broadcast %96 : vector<16x1xf32> to vector<16x32xf32>
    %98 = arith.subf %90, %97 : vector<16x32xf32>
    %99 = arith.mulf %98, %98 : vector<16x32xf32>
    %cst_47 = arith.constant dense<0.000000e+00> : vector<16xf32>
    %100 = vector.multi_reduction <add>, %99, %cst_47 [1] : vector<16x32xf32> to vector<16xf32>
    %101 = vector.shape_cast %100 : vector<16xf32> to vector<16x1xf32>
    %cst_48 = arith.constant 3.200000e+01 : f32
    %102 = vector.broadcast %cst_48 : f32 to vector<16x1xf32>
    %103 = arith.divf %101, %102 : vector<16x1xf32>
    %104 = vector.broadcast %96 : vector<16x1xf32> to vector<16x32xf32>
    %105 = arith.subf %90, %104 : vector<16x32xf32>
    %cst_49 = arith.constant 9.99999996E-13 : f32
    %106 = vector.broadcast %cst_49 : f32 to vector<16x1xf32>
    %107 = arith.addf %103, %106 : vector<16x1xf32>
    %108 = math.rsqrt %107 : vector<16x1xf32>
    %109 = vector.broadcast %108 : vector<16x1xf32> to vector<16x32xf32>
    %110 = arith.mulf %105, %109 : vector<16x32xf32>
    %111 = vector.broadcast %91 : vector<1x32xf32> to vector<16x32xf32>
    %112 = arith.mulf %111, %110 : vector<16x32xf32>
    %113 = vector.broadcast %92 : vector<1x32xf32> to vector<16x32xf32>
    %114 = arith.addf %112, %113 : vector<16x32xf32>
    %c0_50 = arith.constant 0 : index
    %c0_51 = arith.constant 0 : index
    %115 = vector.load %arg8[%c0_50, %c0_51] : memref<32x64xf32, #tpu.memory_space<vmem>>, vector<32x64xf32>
    %cst_52 = arith.constant dense<0.000000e+00> : vector<16x64xf32>
    %116 = tpu.matmul %114, %115, %cst_52 {dimension_numbers = #tpu.dot_dimension_numbers<[1], [0], [0], [1], [0, 0, 1, 1], [], []>} : vector<16x32xf32>, vector<32x64xf32>, vector<16x64xf32> -> vector<16x64xf32>
    %c0_53 = arith.constant 0 : index
    %c0_54 = arith.constant 0 : index
    %117 = vector.load %arg9[%c0_53, %c0_54] : memref<1x64xf32, #tpu.memory_space<vmem>>, vector<1x64xf32>
    %118 = vector.broadcast %117 : vector<1x64xf32> to vector<16x64xf32>
    %119 = arith.addf %116, %118 : vector<16x64xf32>
    %cst_55 = arith.constant 5.000000e-01 : f32
    %120 = vector.broadcast %cst_55 : f32 to vector<16x64xf32>
    %121 = arith.mulf %119, %120 : vector<16x64xf32>
    %cst_56 = arith.constant 1.41421354 : f32
    %122 = vector.broadcast %cst_56 : f32 to vector<16x64xf32>
    %123 = arith.divf %119, %122 : vector<16x64xf32>
    %124 = math.erf %123 : vector<16x64xf32>
    %cst_57 = arith.constant 1.000000e+00 : f32
    %125 = vector.broadcast %cst_57 : f32 to vector<16x64xf32>
    %126 = arith.addf %125, %124 : vector<16x64xf32>
    %127 = arith.mulf %121, %126 : vector<16x64xf32>
    %c0_58 = arith.constant 0 : index
    %c0_59 = arith.constant 0 : index
    %128 = vector.load %arg10[%c0_58, %c0_59] : memref<64x32xf32, #tpu.memory_space<vmem>>, vector<64x32xf32>
    %cst_60 = arith.constant dense<0.000000e+00> : vector<16x32xf32>
    %129 = tpu.matmul %127, %128, %cst_60 {dimension_numbers = #tpu.dot_dimension_numbers<[1], [0], [0], [1], [0, 0, 1, 1], [], []>} : vector<16x64xf32>, vector<64x32xf32>, vector<16x32xf32> -> vector<16x32xf32>
    %c0_61 = arith.constant 0 : index
    %c0_62 = arith.constant 0 : index
    %130 = vector.load %arg11[%c0_61, %c0_62] : memref<1x32xf32, #tpu.memory_space<vmem>>, vector<1x32xf32>
    %131 = vector.broadcast %130 : vector<1x32xf32> to vector<16x32xf32>
    %132 = arith.addf %129, %131 : vector<16x32xf32>
    %133 = arith.addf %132, %114 : vector<16x32xf32>
    %c0_63 = arith.constant 0 : index
    %c0_64 = arith.constant 0 : index
    %134 = vector.load %arg12[%c0_63, %c0_64] : memref<1x32xf32, #tpu.memory_space<vmem>>, vector<1x32xf32>
    %c0_65 = arith.constant 0 : index
    %c0_66 = arith.constant 0 : index
    %135 = vector.load %arg13[%c0_65, %c0_66] : memref<1x32xf32, #tpu.memory_space<vmem>>, vector<1x32xf32>
    %cst_67 = arith.constant dense<0.000000e+00> : vector<16xf32>
    %136 = vector.multi_reduction <add>, %133, %cst_67 [1] : vector<16x32xf32> to vector<16xf32>
    %137 = vector.shape_cast %136 : vector<16xf32> to vector<16x1xf32>
    %cst_68 = arith.constant 3.200000e+01 : f32
    %138 = vector.broadcast %cst_68 : f32 to vector<16x1xf32>
    %139 = arith.divf %137, %138 : vector<16x1xf32>
    %140 = vector.broadcast %139 : vector<16x1xf32> to vector<16x32xf32>
    %141 = arith.subf %133, %140 : vector<16x32xf32>
    %142 = arith.mulf %141, %141 : vector<16x32xf32>
    %cst_69 = arith.constant dense<0.000000e+00> : vector<16xf32>
    %143 = vector.multi_reduction <add>, %142, %cst_69 [1] : vector<16x32xf32> to vector<16xf32>
    %144 = vector.shape_cast %143 : vector<16xf32> to vector<16x1xf32>
    %cst_70 = arith.constant 3.200000e+01 : f32
    %145 = vector.broadcast %cst_70 : f32 to vector<16x1xf32>
    %146 = arith.divf %144, %145 : vector<16x1xf32>
    %147 = vector.broadcast %139 : vector<16x1xf32> to vector<16x32xf32>
    %148 = arith.subf %133, %147 : vector<16x32xf32>
    %cst_71 = arith.constant 9.99999996E-13 : f32
    %149 = vector.broadcast %cst_71 : f32 to vector<16x1xf32>
    %150 = arith.addf %146, %149 : vector<16x1xf32>
    %151 = math.rsqrt %150 : vector<16x1xf32>
    %152 = vector.broadcast %151 : vector<16x1xf32> to vector<16x32xf32>
    %153 = arith.mulf %148, %152 : vector<16x32xf32>
    %154 = vector.broadcast %134 : vector<1x32xf32> to vector<16x32xf32>
    %155 = arith.mulf %154, %153 : vector<16x32xf32>
    %156 = vector.broadcast %135 : vector<1x32xf32> to vector<16x32xf32>
    %157 = arith.addf %155, %156 : vector<16x32xf32>
    %c0_72 = arith.constant 0 : index
    %c0_73 = arith.constant 0 : index
    %158 = vector.load %arg14[%c0_72, %c0_73] : memref<16x32xf32, #tpu.memory_space<vmem>>, vector<16x32xf32>
    tpu.vector_store %arg14[%c0_72, %c0_73], %157 {strides = array<i32>} : memref<16x32xf32, #tpu.memory_space<vmem>>, vector<16x32xf32>,
    return
  }
}

</mosaic_0001>

<llo_original>
// kernel: bert_layer_forward.1
$region0: #{bert_layer_forward.1}
  #allocation0 [shape = 'u32[]', space=smem, size = 0x4, offset = 0x4, fixed_abs, tag = 'smem constant byte address 0x4 - core index']
  #allocation1 [shape = 'u32[72,128]{1,0:T(1,128)}', space=vmem, size = 0x9000, scoped, tag = 'internal scratch']
  %s0 = inlined_call_operand.hbm [shape: f32[16,32], index: 0, kind: input, shape index: {}]
  %s1 = inlined_call_operand.hbm [shape: f32[16,16], index: 1, kind: input, shape index: {}]
  %s2 = inlined_call_operand.vmem [shape: f32[32,96], index: 2, kind: input, shape index: {}]
  %s3 = inlined_call_operand.vmem [shape: f32[1,96], index: 3, kind: input, shape index: {}]
  %s4 = inlined_call_operand.vmem [shape: f32[32,32], index: 4, kind: input, shape index: {}]
  %s5 = inlined_call_operand.vmem [shape: f32[1,32], index: 5, kind: input, shape index: {}]
  %s6 = inlined_call_operand.vmem [shape: f32[1,32], index: 6, kind: input, shape index: {}]
  %s7 = inlined_call_operand.vmem [shape: f32[1,32], index: 7, kind: input, shape index: {}]
  %s8 = inlined_call_operand.vmem [shape: f32[32,64], index: 8, kind: input, shape index: {}]
  %s9 = inlined_call_operand.vmem [shape: f32[1,64], index: 9, kind: input, shape index: {}]
  %s10 = inlined_call_operand.vmem [shape: f32[64,32], index: 10, kind: input, shape index: {}]
  %s11 = inlined_call_operand.vmem [shape: f32[1,32], index: 11, kind: input, shape index: {}]
  %s12 = inlined_call_operand.vmem [shape: f32[1,32], index: 12, kind: input, shape index: {}]
  %s13 = inlined_call_operand.vmem [shape: f32[1,32], index: 13, kind: input, shape index: {}]
  %s14 = inlined_call_operand.hbm [shape: f32[16,32], index: 14, kind: output, shape index: {0}]
  %s15 = inlined_call_operand.vmem [shape: f32[16,64], index: 15, kind: output, shape index: {1}]
  %16 = xla_tuple %s14, %s15
  %s17 = sld [smem:[#allocation0]]
  $region82: #{bert_layer_forward.1} parent=0
    _
  %s19 = ssub.s32 1, %s17
  %s20 = scalar_select 0, %s19, %s17
  $region1: #{bert_layer_forward.1} parent=0
    #allocation2 [shape = 'u8[8192]{0}', space=vmem, size = 0x2000, scoped, tag = 'input window, operand 0, single buffered']
    #allocation3 [shape = 's32[1]{0}', space=sflag, size = 0x4, scoped, tag = 'scoped memory for bert_layer_forward.1']
    #allocation4 [shape = 's32[1]{0}', space=sflag, size = 0x4, scoped, tag = 'scoped memory for bert_layer_forward.1']
    #allocation5 [shape = 'u8[8192]{0}', space=vmem, size = 0x2000, scoped, tag = 'input window, operand 1, single buffered']
    #allocation6 [shape = 's32[1]{0}', space=sflag, size = 0x4, scoped, tag = 'scoped memory for bert_layer_forward.1']
    #allocation7 [shape = 'u8[8192]{0}', space=vmem, size = 0x2000, scoped, tag = 'output window, operand 0, single buffered']
    %21 = vsyncpa [#allocation3], 0
    %22 = vsyncpa [#allocation6], 0
    %23 = vsyncpa [#allocation4], 0
    // Predicated region
    $region2: #{bert_layer_forward.1} parent=1 // pred_check
      _
    $region3: #{bert_layer_forward.1} parent=1 // pred_check_branch
      %25 = sbr.rel (0) target = $region5
    $region4: #{bert_layer_forward.1} parent=1 // pred_region
      %27 = vsyncadd [#allocation3], 0
      %s28 = sshll.u32 %s0, 4
      %s29 = int_to_ptr.hbm [resolvable:$true] %s28
      %s30 = sshll.u32 [#allocation2], 4
      %s31 = int_to_ptr.vmem [resolvable:$true] %s30
      %36 = dma.hbm_to_vmem [thread:$0]  %s29, 256, %s31, [#allocation3], 128, 128, 8
    $region5: #{bert_layer_forward.1} parent=1 // pred_fallthru
      _
    // Predicated region
    $region6: #{bert_layer_forward.1} parent=1 // pred_check
      _
    $region7: #{bert_layer_forward.1} parent=1 // pred_check_branch
      %38 = sbr.rel (0) target = $region9
    $region8: #{bert_layer_forward.1} parent=1 // pred_region
      %40 = vsyncadd [#allocation6], 0
      %s41 = sshll.u32 %s1, 4
      %s42 = int_to_ptr.hbm [resolvable:$true] %s41
      %s43 = sshll.u32 [#allocation5], 4
      %s44 = int_to_ptr.vmem [resolvable:$true] %s43
      %49 = dma.hbm_to_vmem [thread:$0]  %s42, 256, %s44, [#allocation6], 128, 128, 8
    $region9: #{bert_layer_forward.1} parent=1 // pred_fallthru
      _
    // Predicated region
    $region10: #{bert_layer_forward.1} parent=1 // pred_check
      _
    $region11: #{bert_layer_forward.1} parent=1 // pred_check_branch
      %51 = sbr.rel (0) target = $region13
    $region12: #{bert_layer_forward.1} parent=1 // pred_region
      _
    $region13: #{bert_layer_forward.1} parent=1 // pred_fallthru
      _
    // Predicated region
    $region14: #{bert_layer_forward.1} parent=1 // pred_check
      _
    $region15: #{bert_layer_forward.1} parent=1 // pred_check_branch
      %53 = sbr.rel (0) target = $region17
    $region16: #{bert_layer_forward.1} parent=1 // pred_region
      _
    $region17: #{bert_layer_forward.1} parent=1 // pred_fallthru
      _
    // Predicated region
    $region18: #{bert_layer_forward.1} parent=1 // pred_check
      _
    $region19: #{bert_layer_forward.1} parent=1 // pred_check_branch
      %55 = sbr.rel (0) target = $region21
    $region20: #{bert_layer_forward.1} parent=1 // pred_region
      _
    $region21: #{bert_layer_forward.1} parent=1 // pred_fallthru
      _
    // Predicated region
    $region22: #{bert_layer_forward.1} parent=1 // pred_check
      _
    $region23: #{bert_layer_forward.1} parent=1 // pred_check_branch
      %57 = sbr.rel (0) target = $region25
    $region24: #{bert_layer_forward.1} parent=1 // pred_region
      _
    $region25: #{bert_layer_forward.1} parent=1 // pred_fallthru
      _
    // Predicated region
    $region26: #{bert_layer_forward.1} parent=1 // pred_check
      _
    $region27: #{bert_layer_forward.1} parent=1 // pred_check_branch
      %59 = sbr.rel (0) target = $region29
    $region28: #{bert_layer_forward.1} parent=1 // pred_region
      _
    $region29: #{bert_layer_forward.1} parent=1 // pred_fallthru
      _
    // Predicated region
    $region30: #{bert_layer_forward.1} parent=1 // pred_check
      _
    $region31: #{bert_layer_forward.1} parent=1 // pred_check_branch
      %61 = sbr.rel (0) target = $region33
    $region32: #{bert_layer_forward.1} parent=1 // pred_region
      _
    $region33: #{bert_layer_forward.1} parent=1 // pred_fallthru
      _
    // Predicated region
    $region34: #{bert_layer_forward.1} parent=1 // pred_check
      _
    $region35: #{bert_layer_forward.1} parent=1 // pred_check_branch
      %63 = sbr.rel (0) target = $region37
    $region36: #{bert_layer_forward.1} parent=1 // pred_region
      _
    $region37: #{bert_layer_forward.1} parent=1 // pred_fallthru
      _
    // Predicated region
    $region38: #{bert_layer_forward.1} parent=1 // pred_check
      _
    $region39: #{bert_layer_forward.1} parent=1 // pred_check_branch
      %65 = sbr.rel (0) target = $region41
    $region40: #{bert_layer_forward.1} parent=1 // pred_region
      _
    $region41: #{bert_layer_forward.1} parent=1 // pred_fallthru
      _
    // Predicated region
    $region42: #{bert_layer_forward.1} parent=1 // pred_check
      _
    $region43: #{bert_layer_forward.1} parent=1 // pred_check_branch
      %67 = sbr.rel (0) target = $region45
    $region44: #{bert_layer_forward.1} parent=1 // pred_region
      _
    $region45: #{bert_layer_forward.1} parent=1 // pred_fallthru
      _
    // Predicated region
    $region46: #{bert_layer_forward.1} parent=1 // pred_check
      _
    $region47: #{bert_layer_forward.1} parent=1 // pred_check_branch
      %69 = sbr.rel (0) target = $region49
    $region48: #{bert_layer_forward.1} parent=1 // pred_region
      _
    $region49: #{bert_layer_forward.1} parent=1 // pred_fallthru
      _
    // Predicated region
    $region50: #{bert_layer_forward.1} parent=1 // pred_check
      _
    $region51: #{bert_layer_forward.1} parent=1 // pred_check_branch
      %71 = sbr.rel (0) target = $region53
    $region52: #{bert_layer_forward.1} parent=1 // pred_region
      _
    $region53: #{bert_layer_forward.1} parent=1 // pred_fallthru
      _
    // Predicated region
    $region54: #{bert_layer_forward.1} parent=1 // pred_check
      _
    $region55: #{bert_layer_forward.1} parent=1 // pred_check_branch
      %73 = sbr.rel (0) target = $region57
    $region56: #{bert_layer_forward.1} parent=1 // pred_region
      _
    $region57: #{bert_layer_forward.1} parent=1 // pred_fallthru
      _
    // Predicated region
    $region58: #{bert_layer_forward.1} parent=1 // pred_check
      _
    $region59: #{bert_layer_forward.1} parent=1 // pred_check_branch
      %75 = sbr.rel (0) target = $region61
    $region60: #{bert_layer_forward.1} parent=1 // pred_region
      %77 = dma.done [#allocation3], 256
    $region61: #{bert_layer_forward.1} parent=1 // pred_fallthru
      _
    // Predicated region
    $region62: #{bert_layer_forward.1} parent=1 // pred_check
      _
    $region63: #{bert_layer_forward.1} parent=1 // pred_check_branch
      %79 = sbr.rel (0) target = $region65
    $region64: #{bert_layer_forward.1} parent=1 // pred_region
      %81 = dma.done [#allocation6], 256
    $region65: #{bert_layer_forward.1} parent=1 // pred_fallthru
      _
    %v82 = vld [vmem:[#allocation2] sm:$0xff]
    %v83 = vld [vmem:[#allocation2 + $0x8] sm:$0xff]
    %v84 = vld [vmem:[%s2] sm:$0xff]
    %v85 = vld [vmem:[%s2 + $0x8] sm:$0xff]
    %v86 = vld [vmem:[%s2 + $0x10] sm:$0xff]
    %v87 = vld [vmem:[%s2 + $0x18] sm:$0xff]
    %v88 = vld [vmem:[%s3] sm:$0x1]
    %v90 = vperm.slane %v88, 0
    %vm92 = vcmask 261120
    %v94 = vsel %vm92, %v82, 0
    %v97 = vsel %vm92, %v83, 0
    %99 = vmatpush.msra.mxu0 0.0
    %100 = vmatpush.msra.mxu0 0.0
    %101 = vmatpush.msra.mxu0 0.0
    %102 = vmatpush.msra.mxu0 0.0
    %103 = vmatpush.msra.mxu0 0.0
    %104 = vmatpush.msra.mxu0 0.0
    %105 = vmatpush.msra.mxu0 0.0
    %106 = vmatpush.msra.mxu0 0.0
    %107 = vmatpush.msra.mxu0 0.0
    %108 = vmatpush.msra.mxu0 0.0
    %109 = vmatpush.msra.mxu0 0.0
    %110 = vmatpush.msra.mxu0 0.0
    %111 = vmatpush.msra.mxu0 %v87
    %112 = vmatpush.msra.mxu0 %v86
    %113 = vmatpush.msra.mxu0 %v85
    %114 = vmatpush.msra.mxu0 %v84
    %115 = vmatmul.f32.gmra.mxu0 %v94
    %v116 = vpop.f32.mrf.mxu0
    %v117 = vadd.f32 %v90, %v116
    %118 = vmatmul.f32.gmra.mxu0 %v97
    %v119 = vpop.f32.mrf.mxu0
    %v120 = vadd.f32 %v90, %v119
    %121 = vdwg.mxu0
    %v122 = vmul.f32 %v117, 0.35355338
    %v123 = vmul.f32 %v120, 0.35355338
    %v124 = vld [vmem:[#allocation5] sm:$0xff]
    %v125 = vld [vmem:[#allocation5 + $0x8] sm:$0xff]
    %v126 = vld [vmem:[%s5] sm:$0x1]
    %v128 = vperm.slane %v126, 0
    %v130 = vadd.f32 %v82, %v128
    %v131 = vadd.f32 %v83, %v128
    %134 = vrot.lane.b32.xlu0 %v117, 96
    %v135 = vpop.permute.xlu0 %134
    %136 = vrot.lane.b32.xlu0 %v120, 96
    %v137 = vpop.permute.xlu0 %136
    %vm138 = vcmask 64512
    %v140 = vsel %vm138, %v122, 0
    %v143 = vsel %vm138, %v123, 0
    %v145 = vsel %vm138, %v135, 0
    %v147 = vsel %vm138, %v137, 0
    %149 = vmatpush.xpose.msra.mxu0 0.0
    %150 = vmatpush.xpose.msra.mxu0 0.0
    %151 = vmatpush.xpose.msra.mxu0 0.0
    %152 = vmatpush.xpose.msra.mxu0 0.0
    %153 = vmatpush.xpose.msra.mxu0 0.0
    %154 = vmatpush.xpose.msra.mxu0 0.0
    %155 = vmatpush.xpose.msra.mxu0 0.0
    %156 = vmatpush.xpose.msra.mxu0 0.0
    %157 = vmatpush.xpose.msra.mxu0 0.0
    %158 = vmatpush.xpose.msra.mxu0 0.0
    %159 = vmatpush.xpose.msra.mxu0 0.0
    %160 = vmatpush.xpose.msra.mxu0 0.0
    %161 = vmatpush.xpose.msra.mxu0 0.0
    %162 = vmatpush.xpose.msra.mxu0 0.0
    %163 = vmatpush.xpose.msra.mxu0 %v147
    %164 = vmatpush.xpose.msra.mxu0 %v145
    %165 = vmatmul.f32.gmra.mxu0 %v140
    %v166 = vpop.f32.mrf.mxu0
    %v167 = vadd.f32 %v124, %v166
    %168 = vmatmul.f32.gmra.mxu0 %v143
    %v169 = vpop.f32.mrf.mxu0
    %v170 = vadd.f32 %v125, %v169
    %171 = vdwg.mxu0
    %vm172 = vcmask 130048
    %v173 = vsel %vm172, %v167, -inf
    %174 = vmax.xlane.f32.xlu0 %v173
    %v175 = vpop.xlane.xlu0 %174
    %v176 = vsel %vm172, %v170, -inf
    %177 = vmax.xlane.f32.xlu0 %v176
    %v178 = vpop.xlane.xlu0 %177
    %v179 = vsub.f32 %v167, %v175
    %v180 = vsub.f32 %v170, %v178
    %v181 = vmul.f32 %v179, 1.442695
    %v182 = vpow.pop %v181
    %v183 = vmul.f32 %v180, 1.442695
    %v184 = vpow.pop %v183
    %v185 = vsel %vm172, %v182, 0.0
    %186 = vadd.xlane.f32.xlu0 %v185
    %v187 = vpop.xlane.xlu0 %186
    %v188 = vsel %vm172, %v184, 0.0
    %189 = vadd.xlane.f32.xlu0 %v188
    %v190 = vpop.xlane.xlu0 %189
    %v191 = vrcp.pop %v187
    %v192 = vmul.f32 %v187, %v191
    %v193 = vsub.f32 1.0, %v192
    %v194 = vmul.f32 %v191, %v193
    %v195 = vadd.f32 %v191, %v194
    %vm196 = vweird.f32 %v187
    %vm197 = vweird.f32 %v191
    %vm198 = vmor %vm196, %vm197
    %v199 = vsel %vm198, %v191, %v195
    %v200 = vand.u32 2147483647, %v187
    %vm201 = vcmp.eq.f32.partialorder %v200, 8.507059e+37
    %v202 = vand.u32 %v187, 2147483648
    %v203 = vor.u32 1.1754944e-38, %v202
    %v204 = vsel %vm201, %v203, %v199
    %v205 = vmul.f32 %v182, %v204
    %v206 = vrcp.pop %v190
    %v207 = vmul.f32 %v190, %v206
    %v208 = vsub.f32 1.0, %v207
    %v209 = vmul.f32 %v206, %v208
    %v210 = vadd.f32 %v206, %v209
    %vm211 = vweird.f32 %v190
    %vm212 = vweird.f32 %v206
    %vm213 = vmor %vm211, %vm212
    %v214 = vsel %vm213, %v206, %v210
    %v215 = vand.u32 2147483647, %v190
    %vm216 = vcmp.eq.f32.partialorder %v215, 8.507059e+37
    %v217 = vand.u32 %v190, 2147483648
    %v218 = vor.u32 1.1754944e-38, %v217
    %v219 = vsel %vm216, %v218, %v214
    %v220 = vmul.f32 %v184, %v219
    %221 = vst.msk [vmem:[%s15] sm:$0xff] %vm172, %v205
    %222 = vst.msk [vmem:[%s15 + $0x8] sm:$0xff] %vm172, %v220
    %223 = vrot.lane.b32.xlu0 %v117, 64
    %v224 = vpop.permute.xlu0 %223
    %225 = vrot.lane.b32.xlu0 %v120, 64
    %v226 = vpop.permute.xlu0 %225
    %v230 = vsel %vm172, %v205, 0
    %v233 = vsel %vm172, %v220, 0
    %235 = vmatpush.msra.mxu0 0.0
    %236 = vmatpush.msra.mxu0 0.0
    %237 = vmatpush.msra.mxu0 0.0
    %238 = vmatpush.msra.mxu0 0.0
    %239 = vmatpush.msra.mxu0 0.0
    %240 = vmatpush.msra.mxu0 0.0
    %241 = vmatpush.msra.mxu0 0.0
    %242 = vmatpush.msra.mxu0 0.0
    %243 = vmatpush.msra.mxu0 0.0
    %244 = vmatpush.msra.mxu0 0.0
    %245 = vmatpush.msra.mxu0 0.0
    %246 = vmatpush.msra.mxu0 0.0
    %247 = vmatpush.msra.mxu0 0.0
    %248 = vmatpush.msra.mxu0 0.0
    %249 = vmatpush.msra.mxu0 %v226
    %250 = vmatpush.msra.mxu0 %v224
    %251 = vmatmul.f32.gmra.mxu0 %v230
    %v252 = vpop.f32.mrf.mxu0
    %v253 = vadd.f32 0.0, %v252
    %254 = vmatmul.f32.gmra.mxu0 %v233
    %v255 = vpop.f32.mrf.mxu0
    %v256 = vadd.f32 0.0, %v255
    %257 = vdwg.mxu0
    %v258 = vld [vmem:[%s4] sm:$0xff]
    %v260 = vsel %vm138, %v253, 0
    %v263 = vsel %vm138, %v256, 0
    %265 = vmatpush.msra.mxu0 0.0
    %266 = vmatpush.msra.mxu0 0.0
    %267 = vmatpush.msra.mxu0 0.0
    %268 = vmatpush.msra.mxu0 0.0
    %269 = vmatpush.msra.mxu0 0.0
    %270 = vmatpush.msra.mxu0 0.0
    %271 = vmatpush.msra.mxu0 0.0
    %272 = vmatpush.msra.mxu0 0.0
    %273 = vmatpush.msra.mxu0 0.0
    %274 = vmatpush.msra.mxu0 0.0
    %275 = vmatpush.msra.mxu0 0.0
    %276 = vmatpush.msra.mxu0 0.0
    %277 = vmatpush.msra.mxu0 0.0
    %278 = vmatpush.msra.mxu0 0.0
    %279 = vmatpush.msra.mxu0 0.0
    %280 = vmatpush.msra.mxu0 %v258
    %281 = vmatmul.f32.gmra.mxu0 %v260
    %v282 = vpop.f32.mrf.mxu0
    %v283 = vadd.f32 0.0, %v282
    %284 = vmatmul.f32.gmra.mxu0 %v263
    %v285 = vpop.f32.mrf.mxu0
    %v286 = vadd.f32 0.0, %v285
    %287 = vdwg.mxu0
    %v288 = vadd.f32 %v130, %v283
    %v289 = vadd.f32 %v131, %v286
    %290 = vrot.lane.b32.xlu0 %v122, 120
    %v291 = vpop.permute.xlu0 %290
    %292 = vrot.lane.b32.xlu0 %v123, 120
    %v293 = vpop.permute.xlu0 %292
    %294 = vrot.lane.b32.xlu0 %v117, 88
    %v295 = vpop.permute.xlu0 %294
    %296 = vrot.lane.b32.xlu0 %v120, 88
    %v297 = vpop.permute.xlu0 %296
    %v298 = vsel %vm138, %v291, 0
    %v300 = vsel %vm138, %v293, 0
    %v302 = vsel %vm138, %v295, 0
    %v304 = vsel %vm138, %v297, 0
    %306 = vmatpush.xpose.msra.mxu0 0.0
    %307 = vmatpush.xpose.msra.mxu0 0.0
    %308 = vmatpush.xpose.msra.mxu0 0.0
    %309 = vmatpush.xpose.msra.mxu0 0.0
    %310 = vmatpush.xpose.msra.mxu0 0.0
    %311 = vmatpush.xpose.msra.mxu0 0.0
    %312 = vmatpush.xpose.msra.mxu0 0.0
    %313 = vmatpush.xpose.msra.mxu0 0.0
    %314 = vmatpush.xpose.msra.mxu0 0.0
    %315 = vmatpush.xpose.msra.mxu0 0.0
    %316 = vmatpush.xpose.msra.mxu0 0.0
    %317 = vmatpush.xpose.msra.mxu0 0.0
    %318 = vmatpush.xpose.msra.mxu0 0.0
    %319 = vmatpush.xpose.msra.mxu0 0.0
    %320 = vmatpush.xpose.msra.mxu0 %v304
    %321 = vmatpush.xpose.msra.mxu0 %v302
    %322 = vmatmul.f32.gmra.mxu0 %v298
    %v323 = vpop.f32.mrf.mxu0
    %v324 = vadd.f32 %v124, %v323
    %325 = vmatmul.f32.gmra.mxu0 %v300
    %v326 = vpop.f32.mrf.mxu0
    %v327 = vadd.f32 %v125, %v326
    %328 = vdwg.mxu0
    %v329 = vsel %vm172, %v324, -inf
    %330 = vmax.xlane.f32.xlu0 %v329
    %v331 = vpop.xlane.xlu0 %330
    %v332 = vsel %vm172, %v327, -inf
    %333 = vmax.xlane.f32.xlu0 %v332
    %v334 = vpop.xlane.xlu0 %333
    %v335 = vsub.f32 %v324, %v331
    %v336 = vsub.f32 %v327, %v334
    %v337 = vmul.f32 %v335, 1.442695
    %v338 = vpow.pop %v337
    %v339 = vmul.f32 %v336, 1.442695
    %v340 = vpow.pop %v339
    %v341 = vsel %vm172, %v338, 0.0
    %342 = vadd.xlane.f32.xlu0 %v341
    %v343 = vpop.xlane.xlu0 %342
    %v344 = vsel %vm172, %v340, 0.0
    %345 = vadd.xlane.f32.xlu0 %v344
    %v346 = vpop.xlane.xlu0 %345
    %v347 = vrcp.pop %v343
    %v348 = vmul.f32 %v343, %v347
    %v349 = vsub.f32 1.0, %v348
    %v350 = vmul.f32 %v347, %v349
    %v351 = vadd.f32 %v347, %v350
    %vm352 = vweird.f32 %v343
    %vm353 = vweird.f32 %v347
    %vm354 = vmor %vm352, %vm353
    %v355 = vsel %vm354, %v347, %v351
    %v356 = vand.u32 2147483647, %v343
    %vm357 = vcmp.eq.f32.partialorder %v356, 8.507059e+37
    %v358 = vand.u32 %v343, 2147483648
    %v359 = vor.u32 1.1754944e-38, %v358
    %v360 = vsel %vm357, %v359, %v355
    %v361 = vmul.f32 %v338, %v360
    %v362 = vrcp.pop %v346
    %v363 = vmul.f32 %v346, %v362
    %v364 = vsub.f32 1.0, %v363
    %v365 = vmul.f32 %v362, %v364
    %v366 = vadd.f32 %v362, %v365
    %vm367 = vweird.f32 %v346
    %vm368 = vweird.f32 %v362
    %vm369 = vmor %vm367, %vm368
    %v370 = vsel %vm369, %v362, %v366
    %v371 = vand.u32 2147483647, %v346
    %vm372 = vcmp.eq.f32.partialorder %v371, 8.507059e+37
    %v373 = vand.u32 %v346, 2147483648
    %v374 = vor.u32 1.1754944e-38, %v373
    %v375 = vsel %vm372, %v374, %v370
    %v376 = vmul.f32 %v340, %v375
    %379 = vrot.lane.b32.xlu0 %v361, 16
    %v380 = vpop.permute.xlu0 %379
    %381 = vrot.lane.b32.xlu0 %v376, 16
    %v382 = vpop.permute.xlu0 %381
    %vm385 = vcmask 261248
    %386 = vst.msk [vmem:[%s15] sm:$0xff] %vm385, %v380
    %387 = vst.msk [vmem:[%s15 + $0x8] sm:$0xff] %vm385, %v382
    %388 = vrot.lane.b32.xlu0 %v117, 56
    %v389 = vpop.permute.xlu0 %388
    %390 = vrot.lane.b32.xlu0 %v120, 56
    %v391 = vpop.permute.xlu0 %390
    %v394 = vsel %vm172, %v361, 0
    %v396 = vsel %vm172, %v376, 0
    %398 = vmatpush.msra.mxu0 0.0
    %399 = vmatpush.msra.mxu0 0.0
    %400 = vmatpush.msra.mxu0 0.0
    %401 = vmatpush.msra.mxu0 0.0
    %402 = vmatpush.msra.mxu0 0.0
    %403 = vmatpush.msra.mxu0 0.0
    %404 = vmatpush.msra.mxu0 0.0
    %405 = vmatpush.msra.mxu0 0.0
    %406 = vmatpush.msra.mxu0 0.0
    %407 = vmatpush.msra.mxu0 0.0
    %408 = vmatpush.msra.mxu0 0.0
    %409 = vmatpush.msra.mxu0 0.0
    %410 = vmatpush.msra.mxu0 0.0
    %411 = vmatpush.msra.mxu0 0.0
    %412 = vmatpush.msra.mxu0 %v391
    %413 = vmatpush.msra.mxu0 %v389
    %414 = vmatmul.f32.gmra.mxu0 %v394
    %v415 = vpop.f32.mrf.mxu0
    %v416 = vadd.f32 0.0, %v415
    %417 = vmatmul.f32.gmra.mxu0 %v396
    %v418 = vpop.f32.mrf.mxu0
    %v419 = vadd.f32 0.0, %v418
    %420 = vdwg.mxu0
    %v421 = vld [vmem:[%s4 + $0x8] sm:$0xff]
    %v423 = vsel %vm138, %v416, 0
    %v426 = vsel %vm138, %v419, 0
    %428 = vmatpush.msra.mxu0 0.0
    %429 = vmatpush.msra.mxu0 0.0
    %430 = vmatpush.msra.mxu0 0.0
    %431 = vmatpush.msra.mxu0 0.0
    %432 = vmatpush.msra.mxu0 0.0
    %433 = vmatpush.msra.mxu0 0.0
    %434 = vmatpush.msra.mxu0 0.0
    %435 = vmatpush.msra.mxu0 0.0
    %436 = vmatpush.msra.mxu0 0.0
    %437 = vmatpush.msra.mxu0 0.0
    %438 = vmatpush.msra.mxu0 0.0
    %439 = vmatpush.msra.mxu0 0.0
    %440 = vmatpush.msra.mxu0 0.0
    %441 = vmatpush.msra.mxu0 0.0
    %442 = vmatpush.msra.mxu0 0.0
    %443 = vmatpush.msra.mxu0 %v421
    %444 = vmatmul.f32.gmra.mxu0 %v423
    %v445 = vpop.f32.mrf.mxu0
    %v446 = vadd.f32 0.0, %v445
    %447 = vmatmul.f32.gmra.mxu0 %v426
    %v448 = vpop.f32.mrf.mxu0
    %v449 = vadd.f32 0.0, %v448
    %450 = vdwg.mxu0
    %v451 = vadd.f32 %v288, %v446
    %v452 = vadd.f32 %v289, %v449
    %453 = vrot.lane.b32.xlu0 %v122, 112
    %v454 = vpop.permute.xlu0 %453
    %455 = vrot.lane.b32.xlu0 %v123, 112
    %v456 = vpop.permute.xlu0 %455
    %457 = vrot.lane.b32.xlu0 %v117, 80
    %v458 = vpop.permute.xlu0 %457
    %459 = vrot.lane.b32.xlu0 %v120, 80
    %v460 = vpop.permute.xlu0 %459
    %v461 = vsel %vm138, %v454, 0
    %v463 = vsel %vm138, %v456, 0
    %v465 = vsel %vm138, %v458, 0
    %v467 = vsel %vm138, %v460, 0
    %469 = vmatpush.xpose.msra.mxu0 0.0
    %470 = vmatpush.xpose.msra.mxu0 0.0
    %471 = vmatpush.xpose.msra.mxu0 0.0
    %472 = vmatpush.xpose.msra.mxu0 0.0
    %473 = vmatpush.xpose.msra.mxu0 0.0
    %474 = vmatpush.xpose.msra.mxu0 0.0
    %475 = vmatpush.xpose.msra.mxu0 0.0
    %476 = vmatpush.xpose.msra.mxu0 0.0
    %477 = vmatpush.xpose.msra.mxu0 0.0
    %478 = vmatpush.xpose.msra.mxu0 0.0
    %479 = vmatpush.xpose.msra.mxu0 0.0
    %480 = vmatpush.xpose.msra.mxu0 0.0
    %481 = vmatpush.xpose.msra.mxu0 0.0
    %482 = vmatpush.xpose.msra.mxu0 0.0
    %483 = vmatpush.xpose.msra.mxu0 %v467
    %484 = vmatpush.xpose.msra.mxu0 %v465
    %485 = vmatmul.f32.gmra.mxu0 %v461
    %v486 = vpop.f32.mrf.mxu0
    %v487 = vadd.f32 %v124, %v486
    %488 = vmatmul.f32.gmra.mxu0 %v463
    %v489 = vpop.f32.mrf.mxu0
    %v490 = vadd.f32 %v125, %v489
    %491 = vdwg.mxu0
    %v492 = vsel %vm172, %v487, -inf
    %493 = vmax.xlane.f32.xlu0 %v492
    %v494 = vpop.xlane.xlu0 %493
    %v495 = vsel %vm172, %v490, -inf
    %496 = vmax.xlane.f32.xlu0 %v495
    %v497 = vpop.xlane.xlu0 %496
    %v498 = vsub.f32 %v487, %v494
    %v499 = vsub.f32 %v490, %v497
    %v500 = vmul.f32 %v498, 1.442695
    %v501 = vpow.pop %v500
    %v502 = vmul.f32 %v499, 1.442695
    %v503 = vpow.pop %v502
    %v504 = vsel %vm172, %v501, 0.0
    %505 = vadd.xlane.f32.xlu0 %v504
    %v506 = vpop.xlane.xlu0 %505
    %v507 = vsel %vm172, %v503, 0.0
    %508 = vadd.xlane.f32.xlu0 %v507
    %v509 = vpop.xlane.xlu0 %508
    %v510 = vrcp.pop %v506
    %v511 = vmul.f32 %v506, %v510
    %v512 = vsub.f32 1.0, %v511
    %v513 = vmul.f32 %v510, %v512
    %v514 = vadd.f32 %v510, %v513
    %vm515 = vweird.f32 %v506
    %vm516 = vweird.f32 %v510
    %vm517 = vmor %vm515, %vm516
    %v518 = vsel %vm517, %v510, %v514
    %v519 = vand.u32 2147483647, %v506
    %vm520 = vcmp.eq.f32.partialorder %v519, 8.507059e+37
    %v521 = vand.u32 %v506, 2147483648
    %v522 = vor.u32 1.1754944e-38, %v521
    %v523 = vsel %vm520, %v522, %v518
    %v524 = vmul.f32 %v501, %v523
    %v525 = vrcp.pop %v509
    %v526 = vmul.f32 %v509, %v525
    %v527 = vsub.f32 1.0, %v526
    %v528 = vmul.f32 %v525, %v527
    %v529 = vadd.f32 %v525, %v528
    %vm530 = vweird.f32 %v509
    %vm531 = vweird.f32 %v525
    %vm532 = vmor %vm530, %vm531
    %v533 = vsel %vm532, %v525, %v529
    %v534 = vand.u32 2147483647, %v509
    %vm535 = vcmp.eq.f32.partialorder %v534, 8.507059e+37
    %v536 = vand.u32 %v509, 2147483648
    %v537 = vor.u32 1.1754944e-38, %v536
    %v538 = vsel %vm535, %v537, %v533
    %v539 = vmul.f32 %v503, %v538
    %542 = vrot.lane.b32.xlu0 %v524, 32
    %v543 = vpop.permute.xlu0 %542
    %544 = vrot.lane.b32.xlu0 %v539, 32
    %v545 = vpop.permute.xlu0 %544
    %vm548 = vcmask 392448
    %549 = vst.msk [vmem:[%s15] sm:$0xff] %vm548, %v543
    %550 = vst.msk [vmem:[%s15 + $0x8] sm:$0xff] %vm548, %v545
    %551 = vrot.lane.b32.xlu0 %v117, 48
    %v552 = vpop.permute.xlu0 %551
    %553 = vrot.lane.b32.xlu0 %v120, 48
    %v554 = vpop.permute.xlu0 %553
    %v557 = vsel %vm172, %v524, 0
    %v559 = vsel %vm172, %v539, 0
    %561 = vmatpush.msra.mxu0 0.0
    %562 = vmatpush.msra.mxu0 0.0
    %563 = vmatpush.msra.mxu0 0.0
    %564 = vmatpush.msra.mxu0 0.0
    %565 = vmatpush.msra.mxu0 0.0
    %566 = vmatpush.msra.mxu0 0.0
    %567 = vmatpush.msra.mxu0 0.0
    %568 = vmatpush.msra.mxu0 0.0
    %569 = vmatpush.msra.mxu0 0.0
    %570 = vmatpush.msra.mxu0 0.0
    %571 = vmatpush.msra.mxu0 0.0
    %572 = vmatpush.msra.mxu0 0.0
    %573 = vmatpush.msra.mxu0 0.0
    %574 = vmatpush.msra.mxu0 0.0
    %575 = vmatpush.msra.mxu0 %v554
    %576 = vmatpush.msra.mxu0 %v552
    %577 = vmatmul.f32.gmra.mxu0 %v557
    %v578 = vpop.f32.mrf.mxu0
    %v579 = vadd.f32 0.0, %v578
    %580 = vmatmul.f32.gmra.mxu0 %v559
    %v581 = vpop.f32.mrf.mxu0
    %v582 = vadd.f32 0.0, %v581
    %583 = vdwg.mxu0
    %v584 = vld [vmem:[%s4 + $0x10] sm:$0xff]
    %v586 = vsel %vm138, %v579, 0
    %v589 = vsel %vm138, %v582, 0
    %591 = vmatpush.msra.mxu0 0.0
    %592 = vmatpush.msra.mxu0 0.0
    %593 = vmatpush.msra.mxu0 0.0
    %594 = vmatpush.msra.mxu0 0.0
    %595 = vmatpush.msra.mxu0 0.0
    %596 = vmatpush.msra.mxu0 0.0
    %597 = vmatpush.msra.mxu0 0.0
    %598 = vmatpush.msra.mxu0 0.0
    %599 = vmatpush.msra.mxu0 0.0
    %600 = vmatpush.msra.mxu0 0.0
    %601 = vmatpush.msra.mxu0 0.0
    %602 = vmatpush.msra.mxu0 0.0
    %603 = vmatpush.msra.mxu0 0.0
    %604 = vmatpush.msra.mxu0 0.0
    %605 = vmatpush.msra.mxu0 0.0
    %606 = vmatpush.msra.mxu0 %v584
    %607 = vmatmul.f32.gmra.mxu0 %v586
    %v608 = vpop.f32.mrf.mxu0
    %v609 = vadd.f32 0.0, %v608
    %610 = vmatmul.f32.gmra.mxu0 %v589
    %v611 = vpop.f32.mrf.mxu0
    %v612 = vadd.f32 0.0, %v611
    %613 = vdwg.mxu0
    %v614 = vadd.f32 %v451, %v609
    %v615 = vadd.f32 %v452, %v612
    %616 = vrot.lane.b32.xlu0 %v122, 104
    %v617 = vpop.permute.xlu0 %616
    %618 = vrot.lane.b32.xlu0 %v123, 104
    %v619 = vpop.permute.xlu0 %618
    %620 = vrot.lane.b32.xlu0 %v117, 72
    %v621 = vpop.permute.xlu0 %620
    %622 = vrot.lane.b32.xlu0 %v120, 72
    %v623 = vpop.permute.xlu0 %622
    %v624 = vsel %vm138, %v617, 0
    %v626 = vsel %vm138, %v619, 0
    %v628 = vsel %vm138, %v621, 0
    %v630 = vsel %vm138, %v623, 0
    %632 = vmatpush.xpose.msra.mxu0 0.0
    %633 = vmatpush.xpose.msra.mxu0 0.0
    %634 = vmatpush.xpose.msra.mxu0 0.0
    %635 = vmatpush.xpose.msra.mxu0 0.0
    %636 = vmatpush.xpose.msra.mxu0 0.0
    %637 = vmatpush.xpose.msra.mxu0 0.0
    %638 = vmatpush.xpose.msra.mxu0 0.0
    %639 = vmatpush.xpose.msra.mxu0 0.0
    %640 = vmatpush.xpose.msra.mxu0 0.0
    %641 = vmatpush.xpose.msra.mxu0 0.0
    %642 = vmatpush.xpose.msra.mxu0 0.0
    %643 = vmatpush.xpose.msra.mxu0 0.0
    %644 = vmatpush.xpose.msra.mxu0 0.0
    %645 = vmatpush.xpose.msra.mxu0 0.0
    %646 = vmatpush.xpose.msra.mxu0 %v630
    %647 = vmatpush.xpose.msra.mxu0 %v628
    %648 = vmatmul.f32.gmra.mxu0 %v624
    %v649 = vpop.f32.mrf.mxu0
    %v650 = vadd.f32 %v124, %v649
    %651 = vmatmul.f32.gmra.mxu0 %v626
    %v652 = vpop.f32.mrf.mxu0
    %v653 = vadd.f32 %v125, %v652
    %654 = vdwg.mxu0
    %v655 = vsel %vm172, %v650, -inf
    %656 = vmax.xlane.f32.xlu0 %v655
    %v657 = vpop.xlane.xlu0 %656
    %v658 = vsel %vm172, %v653, -inf
    %659 = vmax.xlane.f32.xlu0 %v658
    %v660 = vpop.xlane.xlu0 %659
    %v661 = vsub.f32 %v650, %v657
    %v662 = vsub.f32 %v653, %v660
    %v663 = vmul.f32 %v661, 1.442695
    %v664 = vpow.pop %v663
    %v665 = vmul.f32 %v662, 1.442695
    %v666 = vpow.pop %v665
    %v667 = vsel %vm172, %v664, 0.0
    %668 = vadd.xlane.f32.xlu0 %v667
    %v669 = vpop.xlane.xlu0 %668
    %v670 = vsel %vm172, %v666, 0.0
    %671 = vadd.xlane.f32.xlu0 %v670
    %v672 = vpop.xlane.xlu0 %671
    %v673 = vrcp.pop %v669
    %v674 = vmul.f32 %v669, %v673
    %v675 = vsub.f32 1.0, %v674
    %v676 = vmul.f32 %v673, %v675
    %v677 = vadd.f32 %v673, %v676
    %vm678 = vweird.f32 %v669
    %vm679 = vweird.f32 %v673
    %vm680 = vmor %vm678, %vm679
    %v681 = vsel %vm680, %v673, %v677
    %v682 = vand.u32 2147483647, %v669
    %vm683 = vcmp.eq.f32.partialorder %v682, 8.507059e+37
    %v684 = vand.u32 %v669, 2147483648
    %v685 = vor.u32 1.1754944e-38, %v684
    %v686 = vsel %vm683, %v685, %v681
    %v687 = vmul.f32 %v664, %v686
    %v688 = vrcp.pop %v672
    %v689 = vmul.f32 %v672, %v688
    %v690 = vsub.f32 1.0, %v689
    %v691 = vmul.f32 %v688, %v690
    %v692 = vadd.f32 %v688, %v691
    %vm693 = vweird.f32 %v672
    %vm694 = vweird.f32 %v688
    %vm695 = vmor %vm693, %vm694
    %v696 = vsel %vm695, %v688, %v692
    %v697 = vand.u32 2147483647, %v672
    %vm698 = vcmp.eq.f32.partialorder %v697, 8.507059e+37
    %v699 = vand.u32 %v672, 2147483648
    %v700 = vor.u32 1.1754944e-38, %v699
    %v701 = vsel %vm698, %v700, %v696
    %v702 = vmul.f32 %v666, %v701
    %705 = vrot.lane.b32.xlu0 %v687, 48
    %v706 = vpop.permute.xlu0 %705
    %707 = vrot.lane.b32.xlu0 %v702, 48
    %v708 = vpop.permute.xlu0 %707
    %vm711 = vcmask 523648
    %712 = vst.msk [vmem:[%s15] sm:$0xff] %vm711, %v706
    %713 = vst.msk [vmem:[%s15 + $0x8] sm:$0xff] %vm711, %v708
    %714 = vrot.lane.b32.xlu0 %v117, 40
    %v715 = vpop.permute.xlu0 %714
    %716 = vrot.lane.b32.xlu0 %v120, 40
    %v717 = vpop.permute.xlu0 %716
    %v720 = vsel %vm172, %v687, 0
    %v722 = vsel %vm172, %v702, 0
    %724 = vmatpush.msra.mxu0 0.0
    %725 = vmatpush.msra.mxu0 0.0
    %726 = vmatpush.msra.mxu0 0.0
    %727 = vmatpush.msra.mxu0 0.0
    %728 = vmatpush.msra.mxu0 0.0
    %729 = vmatpush.msra.mxu0 0.0
    %730 = vmatpush.msra.mxu0 0.0
    %731 = vmatpush.msra.mxu0 0.0
    %732 = vmatpush.msra.mxu0 0.0
    %733 = vmatpush.msra.mxu0 0.0
    %734 = vmatpush.msra.mxu0 0.0
    %735 = vmatpush.msra.mxu0 0.0
    %736 = vmatpush.msra.mxu0 0.0
    %737 = vmatpush.msra.mxu0 0.0
    %738 = vmatpush.msra.mxu0 %v717
    %739 = vmatpush.msra.mxu0 %v715
    %740 = vmatmul.f32.gmra.mxu0 %v720
    %v741 = vpop.f32.mrf.mxu0
    %v742 = vadd.f32 0.0, %v741
    %743 = vmatmul.f32.gmra.mxu0 %v722
    %v744 = vpop.f32.mrf.mxu0
    %v745 = vadd.f32 0.0, %v744
    %746 = vdwg.mxu0
    %v747 = vld [vmem:[%s4 + $0x18] sm:$0xff]
    %v749 = vsel %vm138, %v742, 0
    %v752 = vsel %vm138, %v745, 0
    %754 = vmatpush.msra.mxu0 0.0
    %755 = vmatpush.msra.mxu0 0.0
    %756 = vmatpush.msra.mxu0 0.0
    %757 = vmatpush.msra.mxu0 0.0
    %758 = vmatpush.msra.mxu0 0.0
    %759 = vmatpush.msra.mxu0 0.0
    %760 = vmatpush.msra.mxu0 0.0
    %761 = vmatpush.msra.mxu0 0.0
    %762 = vmatpush.msra.mxu0 0.0
    %763 = vmatpush.msra.mxu0 0.0
    %764 = vmatpush.msra.mxu0 0.0
    %765 = vmatpush.msra.mxu0 0.0
    %766 = vmatpush.msra.mxu0 0.0
    %767 = vmatpush.msra.mxu0 0.0
    %768 = vmatpush.msra.mxu0 0.0
    %769 = vmatpush.msra.mxu0 %v747
    %770 = vmatmul.f32.gmra.mxu0 %v749
    %v771 = vpop.f32.mrf.mxu0
    %v772 = vadd.f32 0.0, %v771
    %773 = vmatmul.f32.gmra.mxu0 %v752
    %v774 = vpop.f32.mrf.mxu0
    %v775 = vadd.f32 0.0, %v774
    %776 = vdwg.mxu0
    %v777 = vadd.f32 %v614, %v772
    %v778 = vadd.f32 %v615, %v775
    %v779 = vld [vmem:[%s6] sm:$0x1]
    %v780 = vld [vmem:[%s7] sm:$0x1]
    %v781 = vsel %vm92, %v777, 0.0
    %782 = vadd.xlane.f32.xlu0 %v781
    %v783 = vpop.xlane.xlu0 %782
    %v784 = vsel %vm92, %v778, 0.0
    %785 = vadd.xlane.f32.xlu0 %v784
    %v786 = vpop.xlane.xlu0 %785
    %v787 = vrcp.pop 32.0
    %v788 = vmul.f32 32.0, %v787
    %v789 = vsub.f32 1.0, %v788
    %v790 = vmul.f32 %v787, %v789
    %v791 = vadd.f32 %v787, %v790
    %vm792 = vweird.f32 %v787
    %v793 = vsel %vm792, %v787, %v791
    %v794 = vmul.f32 %v783, %v793
    %v795 = vmul.f32 %v786, %v793
    %v796 = vsub.f32 %v777, %v794
    %v797 = vsub.f32 %v778, %v795
    %v798 = vmul.f32 %v796, %v796
    %v799 = vmul.f32 %v797, %v797
    %v800 = vsel %vm92, %v798, 0.0
    %801 = vadd.xlane.f32.xlu0 %v800
    %v802 = vpop.xlane.xlu0 %801
    %v803 = vsel %vm92, %v799, 0.0
    %804 = vadd.xlane.f32.xlu0 %v803
    %v805 = vpop.xlane.xlu0 %804
    %v806 = vmul.f32 %v802, %v793
    %v807 = vmul.f32 %v805, %v793
    %v808 = vadd.f32 %v806, 1e-12
    %v809 = vadd.f32 %v807, 1e-12
    %v810 = vrsqrt.pop %v808
    %v811 = vmul.f32 %v810, %v808
    %v812 = vmul.f32 %v811, %v810
    %v813 = vmul.f32 0.5, %v812
    %v814 = vsub.f32 1.5, %v813
    %v815 = vmul.f32 %v810, %v814
    %vm816 = vweird.f32 %v808
    %vm817 = vweird.f32 %v810
    %vm818 = vmor %vm816, %vm817
    %v819 = vsel %vm818, %v810, %v815
    %v820 = vrsqrt.pop %v809
    %v821 = vmul.f32 %v820, %v809
    %v822 = vmul.f32 %v821, %v820
    %v823 = vmul.f32 0.5, %v822
    %v824 = vsub.f32 1.5, %v823
    %v825 = vmul.f32 %v820, %v824
    %vm826 = vweird.f32 %v809
    %vm827 = vweird.f32 %v820
    %vm828 = vmor %vm826, %vm827
    %v829 = vsel %vm828, %v820, %v825
    %v830 = vmul.f32 %v796, %v819
    %v831 = vmul.f32 %v797, %v829
    %v833 = vperm.slane %v779, 0
    %v835 = vmul.f32 %v833, %v830
    %v836 = vmul.f32 %v833, %v831
    %v838 = vperm.slane %v780, 0
    %v840 = vadd.f32 %v835, %v838
    %v841 = vadd.f32 %v836, %v838
    %v842 = vld [vmem:[%s8] sm:$0xff]
    %v843 = vld [vmem:[%s8 + $0x8] sm:$0xff]
    %v844 = vld [vmem:[%s8 + $0x10] sm:$0xff]
    %v845 = vld [vmem:[%s8 + $0x18] sm:$0xff]
    %v846 = vld [vmem:[%s9] sm:$0x1]
    %v848 = vperm.slane %v846, 0
    %v851 = vsel %vm92, %v840, 0
    %v854 = vsel %vm92, %v841, 0
    %856 = vmatpush.msra.mxu0 0.0
    %857 = vmatpush.msra.mxu0 0.0
    %858 = vmatpush.msra.mxu0 0.0
    %859 = vmatpush.msra.mxu0 0.0
    %860 = vmatpush.msra.mxu0 0.0
    %861 = vmatpush.msra.mxu0 0.0
    %862 = vmatpush.msra.mxu0 0.0
    %863 = vmatpush.msra.mxu0 0.0
    %864 = vmatpush.msra.mxu0 0.0
    %865 = vmatpush.msra.mxu0 0.0
    %866 = vmatpush.msra.mxu0 0.0
    %867 = vmatpush.msra.mxu0 0.0
    %868 = vmatpush.msra.mxu0 %v845
    %869 = vmatpush.msra.mxu0 %v844
    %870 = vmatpush.msra.mxu0 %v843
    %871 = vmatpush.msra.mxu0 %v842
    %872 = vmatmul.f32.gmra.mxu0 %v851
    %v873 = vpop.f32.mrf.mxu0
    %v874 = vadd.f32 %v848, %v873
    %875 = vmatmul.f32.gmra.mxu0 %v854
    %v876 = vpop.f32.mrf.mxu0
    %v877 = vadd.f32 %v848, %v876
    %878 = vdwg.mxu0
    %v879 = vmul.f32 %v874, 0.5
    %v880 = vmul.f32 %v877, 0.5
    %v881 = vrcp.pop 1.4142135
    %v882 = vmul.f32 1.4142135, %v881
    %v883 = vsub.f32 1.0, %v882
    %v884 = vmul.f32 %v881, %v883
    %v885 = vadd.f32 %v881, %v884
    %vm886 = vweird.f32 %v881
    %v887 = vsel %vm886, %v881, %v885
    %v888 = vmul.f32 %v874, %v887
    %v889 = vmul.f32 %v877, %v887
    %v890 = vmul.f32 %v888, %v888
    %v891 = vmin.f32 16.0, %v890
    %v892 = vmul.f32 %v891, 2.1237322e-06
    %v893 = vadd.f32 %v892, 0.00028619796
    %v894 = vmul.f32 %v891, %v893
    %v895 = vadd.f32 %v894, 0.0036580483
    %v896 = vmul.f32 %v891, %v895
    %v897 = vadd.f32 %v896, 0.05243302
    %v898 = vmul.f32 %v891, %v897
    %v899 = vadd.f32 %v898, 0.18741608
    %v900 = vmul.f32 %v891, %v899
    %v901 = vadd.f32 %v900, 1.1283791
    %v902 = vmul.f32 %v888, %v901
    %v903 = vmul.f32 %v891, 3.8918573e-05
    %v904 = vadd.f32 %v903, 0.001143296
    %v905 = vmul.f32 %v891, %v904
    %v906 = vadd.f32 %v905, 0.014752088
    %v907 = vmul.f32 %v891, %v906
    %v908 = vadd.f32 %v907, 0.112945676
    %v909 = vmul.f32 %v891, %v908
    %v910 = vadd.f32 %v909, 0.4994258
    %v911 = vmul.f32 %v891, %v910
    %v912 = vadd.f32 %v911, 1.0
    %v913 = vrcp.pop %v912
    %v914 = vmul.f32 %v912, %v913
    %v915 = vsub.f32 1.0, %v914
    %v916 = vmul.f32 %v913, %v915
    %v917 = vadd.f32 %v913, %v916
    %vm918 = vweird.f32 %v912
    %vm919 = vweird.f32 %v913
    %vm920 = vmor %vm918, %vm919
    %v921 = vsel %vm920, %v913, %v917
    %v922 = vand.u32 2147483647, %v912
    %vm923 = vcmp.eq.f32.partialorder %v922, 8.507059e+37
    %v924 = vand.u32 %v912, 2147483648
    %v925 = vor.u32 1.1754944e-38, %v924
    %v926 = vsel %vm923, %v925, %v921
    %v927 = vmul.f32 %v902, %v926
    %v928 = vmin.f32 %v927, 1.0
    %v929 = vmax.f32 %v928, -1.0
    %v930 = vmul.f32 %v889, %v889
    %v931 = vmin.f32 16.0, %v930
    %v932 = vmul.f32 %v931, 2.1237322e-06
    %v933 = vadd.f32 %v932, 0.00028619796
    %v934 = vmul.f32 %v931, %v933
    %v935 = vadd.f32 %v934, 0.0036580483
    %v936 = vmul.f32 %v931, %v935
    %v937 = vadd.f32 %v936, 0.05243302
    %v938 = vmul.f32 %v931, %v937
    %v939 = vadd.f32 %v938, 0.18741608
    %v940 = vmul.f32 %v931, %v939
    %v941 = vadd.f32 %v940, 1.1283791
    %v942 = vmul.f32 %v889, %v941
    %v943 = vmul.f32 %v931, 3.8918573e-05
    %v944 = vadd.f32 %v943, 0.001143296
    %v945 = vmul.f32 %v931, %v944
    %v946 = vadd.f32 %v945, 0.014752088
    %v947 = vmul.f32 %v931, %v946
    %v948 = vadd.f32 %v947, 0.112945676
    %v949 = vmul.f32 %v931, %v948
    %v950 = vadd.f32 %v949, 0.4994258
    %v951 = vmul.f32 %v931, %v950
    %v952 = vadd.f32 %v951, 1.0
    %v953 = vrcp.pop %v952
    %v954 = vmul.f32 %v952, %v953
    %v955 = vsub.f32 1.0, %v954
    %v956 = vmul.f32 %v953, %v955
    %v957 = vadd.f32 %v953, %v956
    %vm958 = vweird.f32 %v952
    %vm959 = vweird.f32 %v953
    %vm960 = vmor %vm958, %vm959
    %v961 = vsel %vm960, %v953, %v957
    %v962 = vand.u32 2147483647, %v952
    %vm963 = vcmp.eq.f32.partialorder %v962, 8.507059e+37
    %v964 = vand.u32 %v952, 2147483648
    %v965 = vor.u32 1.1754944e-38, %v964
    %v966 = vsel %vm963, %v965, %v961
    %v967 = vmul.f32 %v942, %v966
    %v968 = vmin.f32 %v967, 1.0
    %v969 = vmax.f32 %v968, -1.0
    %v970 = vadd.f32 %v929, 1.0
    %v971 = vadd.f32 %v969, 1.0
    %v972 = vmul.f32 %v879, %v970
    %v973 = vmul.f32 %v880, %v971
    %v974 = vld [vmem:[%s10] sm:$0xff]
    %v975 = vld [vmem:[%s10 + $0x8] sm:$0xff]
    %v976 = vld [vmem:[%s10 + $0x10] sm:$0xff]
    %v977 = vld [vmem:[%s10 + $0x18] sm:$0xff]
    %v978 = vld [vmem:[%s10 + $0x20] sm:$0xff]
    %v979 = vld [vmem:[%s10 + $0x28] sm:$0xff]
    %v980 = vld [vmem:[%s10 + $0x30] sm:$0xff]
    %v981 = vld [vmem:[%s10 + $0x38] sm:$0xff]
    %v982 = vld [vmem:[%s11] sm:$0x1]
    %v984 = vperm.slane %v982, 0
    %vm986 = vcmask 523264
    %v988 = vsel %vm986, %v972, 0
    %v991 = vsel %vm986, %v973, 0
    %993 = vmatpush.msra.mxu0 0.0
    %994 = vmatpush.msra.mxu0 0.0
    %995 = vmatpush.msra.mxu0 0.0
    %996 = vmatpush.msra.mxu0 0.0
    %997 = vmatpush.msra.mxu0 0.0
    %998 = vmatpush.msra.mxu0 0.0
    %999 = vmatpush.msra.mxu0 0.0
    %1000 = vmatpush.msra.mxu0 0.0
    %1001 = vmatpush.msra.mxu0 %v981
    %1002 = vmatpush.msra.mxu0 %v980
    %1003 = vmatpush.msra.mxu0 %v979
    %1004 = vmatpush.msra.mxu0 %v978
    %1005 = vmatpush.msra.mxu0 %v977
    %1006 = vmatpush.msra.mxu0 %v976
    %1007 = vmatpush.msra.mxu0 %v975
    %1008 = vmatpush.msra.mxu0 %v974
    %1009 = vmatmul.f32.gmra.mxu0 %v988
    %v1010 = vpop.f32.mrf.mxu0
    %v1011 = vadd.f32 %v984, %v1010
    %1012 = vmatmul.f32.gmra.mxu0 %v991
    %v1013 = vpop.f32.mrf.mxu0
    %v1014 = vadd.f32 %v984, %v1013
    %1015 = vdwg.mxu0
    %v1016 = vadd.f32 %v1011, %v840
    %v1017 = vadd.f32 %v1014, %v841
    %v1018 = vld [vmem:[%s12] sm:$0x1]
    %v1019 = vld [vmem:[%s13] sm:$0x1]
    %v1020 = vsel %vm92, %v1016, 0.0
    %1021 = vadd.xlane.f32.xlu0 %v1020
    %v1022 = vpop.xlane.xlu0 %1021
    %v1023 = vsel %vm92, %v1017, 0.0
    %1024 = vadd.xlane.f32.xlu0 %v1023
    %v1025 = vpop.xlane.xlu0 %1024
    %v1026 = vmul.f32 %v1022, %v793
    %v1027 = vmul.f32 %v1025, %v793
    %v1028 = vsub.f32 %v1016, %v1026
    %v1029 = vsub.f32 %v1017, %v1027
    %v1030 = vmul.f32 %v1028, %v1028
    %v1031 = vmul.f32 %v1029, %v1029
    %v1032 = vsel %vm92, %v1030, 0.0
    %1033 = vadd.xlane.f32.xlu0 %v1032
    %v1034 = vpop.xlane.xlu0 %1033
    %v1035 = vsel %vm92, %v1031, 0.0
    %1036 = vadd.xlane.f32.xlu0 %v1035
    %v1037 = vpop.xlane.xlu0 %1036
    %v1038 = vmul.f32 %v1034, %v793
    %v1039 = vmul.f32 %v1037, %v793
    %v1040 = vadd.f32 %v1038, 1e-12
    %v1041 = vadd.f32 %v1039, 1e-12
    %v1042 = vrsqrt.pop %v1040
    %v1043 = vmul.f32 %v1042, %v1040
    %v1044 = vmul.f32 %v1043, %v1042
    %v1045 = vmul.f32 0.5, %v1044
    %v1046 = vsub.f32 1.5, %v1045
    %v1047 = vmul.f32 %v1042, %v1046
    %vm1048 = vweird.f32 %v1040
    %vm1049 = vweird.f32 %v1042
    %vm1050 = vmor %vm1048, %vm1049
    %v1051 = vsel %vm1050, %v1042, %v1047
    %v1052 = vrsqrt.pop %v1041
    %v1053 = vmul.f32 %v1052, %v1041
    %v1054 = vmul.f32 %v1053, %v1052
    %v1055 = vmul.f32 0.5, %v1054
    %v1056 = vsub.f32 1.5, %v1055
    %v1057 = vmul.f32 %v1052, %v1056
    %vm1058 = vweird.f32 %v1041
    %vm1059 = vweird.f32 %v1052
    %vm1060 = vmor %vm1058, %vm1059
    %v1061 = vsel %vm1060, %v1052, %v1057
    %v1062 = vmul.f32 %v1028, %v1051
    %v1063 = vmul.f32 %v1029, %v1061
    %v1065 = vperm.slane %v1018, 0
    %v1067 = vmul.f32 %v1065, %v1062
    %v1068 = vmul.f32 %v1065, %v1063
    %v1070 = vperm.slane %v1019, 0
    %v1072 = vadd.f32 %v1067, %v1070
    %v1073 = vadd.f32 %v1068, %v1070
    %1074 = vst.msk [vmem:[#allocation7] sm:$0xff] %vm92, %v1072
    %1075 = vst.msk [vmem:[#allocation7 + $0x8] sm:$0xff] %vm92, %v1073
    // Predicated region
    $region66: #{bert_layer_forward.1} parent=1 // pred_check
      _
    $region67: #{bert_layer_forward.1} parent=1 // pred_check_branch
      %1077 = sbr.rel (0) target = $region69
    $region68: #{bert_layer_forward.1} parent=1 // pred_region
      %1079 = vsyncadd [#allocation4], 0
      %s1080 = sshll.u32 [#allocation7], 4
      %s1081 = int_to_ptr.vmem [resolvable:$true] %s1080
      %s1082 = sshll.u32 %s14, 4
      %s1083 = int_to_ptr.hbm [resolvable:$true] %s1082
      %1088 = dma.vmem_to_hbm [thread:$0]  %s1081, 256, %s1083, [#allocation4], 128, 128, 8
    $region69: #{bert_layer_forward.1} parent=1 // pred_fallthru
      _
    // Predicated region
    $region70: #{bert_layer_forward.1} parent=1 // pred_check
      _
    $region71: #{bert_layer_forward.1} parent=1 // pred_check_branch
      %1090 = sbr.rel (0) target = $region73
    $region72: #{bert_layer_forward.1} parent=1 // pred_region
      _
    $region73: #{bert_layer_forward.1} parent=1 // pred_fallthru
      _
    // Predicated region
    $region74: #{bert_layer_forward.1} parent=1 // pred_check
      _
    $region75: #{bert_layer_forward.1} parent=1 // pred_check_branch
      %1092 = sbr.rel (0) target = $region77
    $region76: #{bert_layer_forward.1} parent=1 // pred_region
      %1094 = dma.done [#allocation4], 256
    $region77: #{bert_layer_forward.1} parent=1 // pred_fallthru
      _
    // Predicated region
    $region78: #{bert_layer_forward.1} parent=1 // pred_check
      _
    $region79: #{bert_layer_forward.1} parent=1 // pred_check_branch
      %1096 = sbr.rel (0) target = $region81
    $region80: #{bert_layer_forward.1} parent=1 // pred_region
      _
    $region81: #{bert_layer_forward.1} parent=1 // pred_fallthru
      _
    %1097 = vsyncpa [#allocation3], 1
    %1098 = vsyncpa [#allocation6], 1
    %1099 = vsyncpa [#allocation4], 1

</llo_original>
